<compile_context>
chip_gen: v7x
topology: tpu7x:2x2x1
jax: 0.10.0
libtpu: 0.0.40
codegen_flags: <defaults>
</compile_context>

<pallas_src>
import jax
import jax.numpy as jnp
from jax.experimental import pallas as pl
from jax.experimental.pallas import tpu as pltpu

HIDDEN = 200      # logical hidden size (matches nn.Linear(state_space_size, 200))
LANE = 128        # lane width for hidden padding
SUBLANE = 8       # sublane granularity for batch tiles


def _round_up(x, m):
    return (x + m - 1) // m * m


def mlp_kernel(x_ref, w1_ref, b1_ref, w2_ref, b2_ref, out_ref):
    # Two MXU matmuls + VPU bias add / ReLU, everything resident in VMEM.
    x = x_ref[...]
    w1 = w1_ref[...]
    if x.dtype != w1.dtype:            # static (trace-time) branch: bf16-operand mode
        x = x.astype(w1.dtype)
    # f32 accumulation; biases are stored f32 so the adds / ReLU stay f32 (v5e-safe).
    h = jnp.dot(x, w1, preferred_element_type=jnp.float32) + b1_ref[...]
    h = jnp.maximum(h, 0.0)            # ReLU (padded hidden lanes stay exactly 0)
    w2 = w2_ref[...]
    y = jnp.dot(h.astype(w2.dtype), w2, preferred_element_type=jnp.float32) + b2_ref[...]
    out_ref[...] = y.astype(out_ref.dtype)


def prepare_params(w1, b1, w2, b2, *, param_dtype=jnp.float32):
    """One-time parameter prep (hoisted out of the hot path).

    w1: (S, H)  first Linear weight, stored (in, out) == PyTorch weight.T
    b1: (1, H) or (H,)
    w2: (H, A)  second Linear weight, stored (in, out)
    b2: (1, A) or (A,)

    Zero-pads H (200 -> 256) — mathematically exact — and optionally casts the weight
    matrices to `param_dtype` (e.g. bf16).  Biases stay f32 so in-kernel add/ReLU is f32.
    """
    S, H = w1.shape
    A = w2.shape[1]
    Hp = _round_up(max(H, 1), LANE)     # 200 -> 256

    w1p = jnp.zeros((S, Hp), jnp.float32).at[:, :H].set(w1.astype(jnp.float32))
    b1p = jnp.zeros((1, Hp), jnp.float32).at[:, :H].set(
        b1.reshape(1, H).astype(jnp.float32))
    w2p = jnp.zeros((Hp, A), jnp.float32).at[:H, :].set(w2.astype(jnp.float32))
    b2p = b2.reshape(1, A).astype(jnp.float32)

    return (w1p.astype(param_dtype), b1p, w2p.astype(param_dtype), b2p)


def network1_forward(x, params, *, block_batch=1024):
    """Forward pass of Network1.  x: (B, S), params from prepare_params().  Returns (B, A)."""
    w1p, b1p, w2p, b2p = params
    B, S = x.shape
    Hp = w1p.shape[1]
    A = w2p.shape[1]
    out_dtype = x.dtype

    flops = 2 * B * (S * Hp + Hp * A)
    bytes_accessed = int(
        B * S * x.dtype.itemsize
        + w1p.size * w1p.dtype.itemsize + b1p.size * 4
        + w2p.size * w2p.dtype.itemsize + b2p.size * 4
        + B * A * jnp.dtype(out_dtype).itemsize)
    cost = pl.CostEstimate(flops=flops, transcendentals=0,
                           bytes_accessed=bytes_accessed)

    # ---- batch tiling without over-padding ----
    block_batch = max(SUBLANE, _round_up(int(block_batch), SUBLANE))
    num_tiles = pl.cdiv(B, block_batch)

    if num_tiles <= 1:
        # Gridless fast path: whole arrays as single VMEM blocks, no pipeline machinery.
        return pl.pallas_call(
            mlp_kernel,
            out_shape=jax.ShapeDtypeStruct((B, A), out_dtype),
            cost_estimate=cost,
        )(x, w1p, b1p, w2p, b2p)

    TB = _round_up(pl.cdiv(B, num_tiles), SUBLANE)
    Bp = _round_up(B, TB)
    xp = x if Bp == B else jnp.zeros((Bp, S), x.dtype).at[:B].set(x)
    grid = (Bp // TB,)

    out = pl.pallas_call(
        mlp_kernel,
        out_shape=jax.ShapeDtypeStruct((Bp, A), out_dtype),
        grid_spec=pl.GridSpec(
            grid=grid,
            in_specs=[
                pl.BlockSpec((TB, S), lambda i: (i, 0)),    # x tile, pipelined
                pl.BlockSpec((S, Hp), lambda i: (0, 0)),    # w1 resident
                pl.BlockSpec((1, Hp), lambda i: (0, 0)),    # b1 resident
                pl.BlockSpec((Hp, A), lambda i: (0, 0)),    # w2 resident
                pl.BlockSpec((1, A), lambda i: (0, 0)),     # b2 resident
            ],
            # Narrow (TB, A) output block: legal (last dim == full array dim); ~32x less
            # writeback than a 128-lane-padded output in this mem-bound kernel.
            out_specs=pl.BlockSpec((TB, A), lambda i: (i, 0)),
        ),
        compiler_params=pltpu.CompilerParams(
            dimension_semantics=("parallel",),   # batch tiles are independent
        ),
        cost_estimate=cost,
    )(xp, w1p, b1p, w2p, b2p)

    # Padded batch rows (if any) hold relu(b1) @ w2 + b2 garbage — must be sliced off here;
    # never consume `out` beyond row B.
    return out if Bp == B else out[:B]


def init_params(key, state_space_size, action_space_size, dtype=jnp.float32):
    """Deterministic init mimicking nn.Linear's U(-1/sqrt(fan_in), 1/sqrt(fan_in))."""
    k1, k2, k3, k4 = jax.random.split(key, 4)
    bound1 = 1.0 / jnp.sqrt(jnp.asarray(state_space_size, dtype))
    bound2 = 1.0 / jnp.sqrt(jnp.asarray(HIDDEN, dtype))
    # stored as (in, out) == PyTorch weight.T
    w1 = jax.random.uniform(k1, (state_space_size, HIDDEN), dtype, -bound1, bound1)
    b1 = jax.random.uniform(k2, (1, HIDDEN), dtype, -bound1, bound1)
    w2 = jax.random.uniform(k3, (HIDDEN, action_space_size), dtype, -bound2, bound2)
    b2 = jax.random.uniform(k4, (1, action_space_size), dtype, -bound2, bound2)
    return w1, b1, w2, b2


def reference_forward(x, w1, b1, w2, b2):
    h = jnp.maximum(x @ w1 + b1, 0.0)
    return h @ w2 + b2


if __name__ == "__main__":
    key = jax.random.PRNGKey(0)
    kx, kp = jax.random.split(key)

    batch = 8
    state_space_size = 32
    action_space_size = 4

    x = jax.random.normal(kx, (batch, state_space_size), jnp.float32)
    w1, b1, w2, b2 = init_params(kp, state_space_size, action_space_size)

    # One-time parameter prep — outside the hot path.
    params = prepare_params(w1, b1, w2, b2)

    # Small batch -> gridless fast path.
    out = jax.block_until_ready(network1_forward(x, params))
    ref = reference_forward(x, w1, b1, w2, b2)
    assert out.shape == (batch, action_space_size)
    assert jnp.allclose(out, ref, atol=1e-5, rtol=1e-5), "mismatch vs reference (small)"

    # Multi-tile path with zero batch over-padding (B=600, block_batch=256 -> TB=200).
    xb = jax.random.normal(kx, (600, state_space_size), jnp.float32)
    out_b = jax.block_until_ready(network1_forward(xb, params, block_batch=256))
    ref_b = reference_forward(xb, w1, b1, w2, b2)
    assert out_b.shape == (600, action_space_size)
    assert jnp.allclose(out_b, ref_b, atol=1e-4, rtol=1e-4), "mismatch vs reference (B=600)"

    # Multi-tile path with residual batch padding (B=500, block_batch=128 -> TB=128, Bp=512).
    xc = jax.random.normal(kx, (500, state_space_size), jnp.float32)
    out_c = jax.block_until_ready(network1_forward(xc, params, block_batch=128))
    ref_c = reference_forward(xc, w1, b1, w2, b2)
    assert out_c.shape == (500, action_space_size)
    assert jnp.allclose(out_c, ref_c, atol=1e-4, rtol=1e-4), "mismatch vs reference (B=500)"

    # bf16 dot-operand variant (halved weight HBM traffic; f32 accumulation) — loose tolerance.
    params_bf16 = prepare_params(w1, b1, w2, b2, param_dtype=jnp.bfloat16)
    out_h = jax.block_until_ready(network1_forward(xb, params_bf16, block_batch=256))
    assert out_h.shape == (600, action_space_size)
    assert jnp.allclose(out_h, ref_b, atol=1e-1, rtol=1e-1), "bf16 variant too far off"

    print("KERNEL_OK")
</pallas_src>

<mosaic_0001>
module attributes {stable_mosaic.version = 11 : i64} {
  func.func @mlp_kernel(%arg0: memref<8x32xf32, #tpu.memory_space<vmem>>, %arg1: memref<32x256xf32, #tpu.memory_space<vmem>>, %arg2: memref<1x256xf32, #tpu.memory_space<vmem>>, %arg3: memref<256x4xf32, #tpu.memory_space<vmem>>, %arg4: memref<1x4xf32, #tpu.memory_space<vmem>>, %arg5: memref<8x4xf32, #tpu.memory_space<vmem>>) attributes {dimension_semantics = [], scalar_prefetch = 0 : i64, scratch_operands = 0 : i64, tpu.core_type = #tpu.core_type<tc>} {
    %c0 = arith.constant 0 : index
    %c0_0 = arith.constant 0 : index
    %0 = vector.load %arg0[%c0, %c0_0] : memref<8x32xf32, #tpu.memory_space<vmem>>, vector<8x32xf32>
    %c0_1 = arith.constant 0 : index
    %c0_2 = arith.constant 0 : index
    %1 = vector.load %arg1[%c0_1, %c0_2] : memref<32x256xf32, #tpu.memory_space<vmem>>, vector<32x256xf32>
    %cst = arith.constant dense<0.000000e+00> : vector<8x256xf32>
    %2 = tpu.matmul %0, %1, %cst {dimension_numbers = #tpu.dot_dimension_numbers<[1], [0], [0], [1], [0, 0, 1, 1], [], []>} : vector<8x32xf32>, vector<32x256xf32>, vector<8x256xf32> -> vector<8x256xf32>
    %c0_3 = arith.constant 0 : index
    %c0_4 = arith.constant 0 : index
    %3 = vector.load %arg2[%c0_3, %c0_4] : memref<1x256xf32, #tpu.memory_space<vmem>>, vector<1x256xf32>
    %4 = vector.broadcast %3 : vector<1x256xf32> to vector<8x256xf32>
    %5 = arith.addf %2, %4 : vector<8x256xf32>
    %cst_5 = arith.constant 0.000000e+00 : f32
    %6 = vector.broadcast %cst_5 : f32 to vector<8x256xf32>
    %7 = arith.maximumf %5, %6 : vector<8x256xf32>
    %c0_6 = arith.constant 0 : index
    %c0_7 = arith.constant 0 : index
    %8 = vector.load %arg3[%c0_6, %c0_7] : memref<256x4xf32, #tpu.memory_space<vmem>>, vector<256x4xf32>
    %cst_8 = arith.constant dense<0.000000e+00> : vector<8x4xf32>
    %9 = tpu.matmul %7, %8, %cst_8 {dimension_numbers = #tpu.dot_dimension_numbers<[1], [0], [0], [1], [0, 0, 1, 1], [], []>} : vector<8x256xf32>, vector<256x4xf32>, vector<8x4xf32> -> vector<8x4xf32>
    %c0_9 = arith.constant 0 : index
    %c0_10 = arith.constant 0 : index
    %10 = vector.load %arg4[%c0_9, %c0_10] : memref<1x4xf32, #tpu.memory_space<vmem>>, vector<1x4xf32>
    %11 = vector.broadcast %10 : vector<1x4xf32> to vector<8x4xf32>
    %12 = arith.addf %9, %11 : vector<8x4xf32>
    %c0_11 = arith.constant 0 : index
    %c0_12 = arith.constant 0 : index
    %13 = vector.load %arg5[%c0_11, %c0_12] : memref<8x4xf32, #tpu.memory_space<vmem>>, vector<8x4xf32>
    tpu.vector_store %arg5[%c0_11, %c0_12], %12 {strides = array<i32>} : memref<8x4xf32, #tpu.memory_space<vmem>>, vector<8x4xf32>,
    return
  }
}

</mosaic_0001>

<llo_original>
// kernel: tpu_custom_call.1
$region0: #{tpu_custom_call.1}
  #allocation0 [shape = 'u32[]', space=smem, size = 0x4, offset = 0x4, fixed_abs, tag = 'smem constant byte address 0x4 - core index']
  #allocation1 [shape = 'u32[144,128]{1,0:T(1,128)}', space=vmem, size = 0x12000, scoped, tag = 'internal scratch']
  %s0 = inlined_call_operand.vmem [shape: f32[8,32], index: 0, kind: input, shape index: {}]
  %s1 = inlined_call_operand.vmem [shape: f32[32,256], index: 1, kind: input, shape index: {}]
  %s2 = inlined_call_operand.vmem [shape: f32[1,256], index: 2, kind: input, shape index: {}]
  %s3 = inlined_call_operand.vmem [shape: f32[256,4], index: 3, kind: input, shape index: {}]
  %s4 = inlined_call_operand.vmem [shape: f32[1,4], index: 4, kind: input, shape index: {}]
  %s5 = inlined_call_operand.vmem [shape: f32[8,4], index: 5, kind: output, shape index: {}]
  %s6 = sld [smem:[#allocation0]]
  $region30: #{tpu_custom_call.1} parent=0
    _
  %s8 = ssub.s32 1, %s6
  %s9 = scalar_select 0, %s8, %s6
  // Predicated region
  $region2: #{tpu_custom_call.1} parent=0 // pred_check
    _
  $region3: #{tpu_custom_call.1} parent=0 // pred_check_branch
    %11 = sbr.rel (0) target = $region5
  $region4: #{tpu_custom_call.1} parent=0 // pred_region
    _
  $region5: #{tpu_custom_call.1} parent=0 // pred_fallthru
    _
  // Predicated region
  $region6: #{tpu_custom_call.1} parent=0 // pred_check
    _
  $region7: #{tpu_custom_call.1} parent=0 // pred_check_branch
    %13 = sbr.rel (0) target = $region9
  $region8: #{tpu_custom_call.1} parent=0 // pred_region
    _
  $region9: #{tpu_custom_call.1} parent=0 // pred_fallthru
    _
  // Predicated region
  $region10: #{tpu_custom_call.1} parent=0 // pred_check
    _
  $region11: #{tpu_custom_call.1} parent=0 // pred_check_branch
    %15 = sbr.rel (0) target = $region13
  $region12: #{tpu_custom_call.1} parent=0 // pred_region
    _
  $region13: #{tpu_custom_call.1} parent=0 // pred_fallthru
    _
  // Predicated region
  $region14: #{tpu_custom_call.1} parent=0 // pred_check
    _
  $region15: #{tpu_custom_call.1} parent=0 // pred_check_branch
    %17 = sbr.rel (0) target = $region17
  $region16: #{tpu_custom_call.1} parent=0 // pred_region
    _
  $region17: #{tpu_custom_call.1} parent=0 // pred_fallthru
    _
  // Predicated region
  $region18: #{tpu_custom_call.1} parent=0 // pred_check
    _
  $region19: #{tpu_custom_call.1} parent=0 // pred_check_branch
    %19 = sbr.rel (0) target = $region21
  $region20: #{tpu_custom_call.1} parent=0 // pred_region
    _
  $region21: #{tpu_custom_call.1} parent=0 // pred_fallthru
    _
  %v20 = vld [vmem:[%s0] sm:$0xff]
  %v21 = vld [vmem:[%s1] sm:$0xff]
  %v22 = vld [vmem:[%s1 + $0x8] sm:$0xff]
  %v23 = vld [vmem:[%s1 + $0x10] sm:$0xff]
  %v24 = vld [vmem:[%s1 + $0x18] sm:$0xff]
  %v25 = vld [vmem:[%s1 + $0x20] sm:$0xff]
  %v26 = vld [vmem:[%s1 + $0x28] sm:$0xff]
  %v27 = vld [vmem:[%s1 + $0x30] sm:$0xff]
  %v28 = vld [vmem:[%s1 + $0x38] sm:$0xff]
  %v29 = vld [vmem:[%s2] sm:$0x3]
  %v31 = vlaneseq
  %v32 = vshrl.u32 %v31, 7
  %v33 = vsub.s32 0, %v32
  %v34 = vrot.slane %v29, %v33
  %v35 = vlaneseq
  %v36 = vshrl.u32 %v35, 7
  %v37 = vsub.s32 1, %v36
  %v38 = vrot.slane %v29, %v37
  %vm41 = vcmask 261120
  %v43 = vsel %vm41, %v20, 0
  %45 = vmatprep.subr.mxu0 %v22
  %46 = vmatpush1.msra.mxu0 %v21
  %47 = vmatprep.subr.mxu0 %v24
  %48 = vmatpush1.msra.mxu0 %v23
  %49 = vmatprep.subr.mxu0 %v26
  %50 = vmatpush1.msra.mxu0 %v25
  %51 = vmatprep.subr.mxu0 %v28
  %52 = vmatpush1.msra.mxu0 %v27
  %53 = vmatprep.subr.mxu0 0.0
  %54 = vmatpush1.msra.mxu0 0.0
  %55 = vmatprep.subr.mxu0 0.0
  %56 = vmatpush1.msra.mxu0 0.0
  %57 = vmatprep.subr.mxu0 0.0
  %58 = vmatpush1.msra.mxu0 0.0
  %59 = vmatprep.subr.mxu0 0.0
  %60 = vmatpush1.msra.mxu0 0.0
  %61 = vmatprep.subr.mxu0 0.0
  %62 = vmatpush1.msra.mxu0 0.0
  %63 = vmatprep.subr.mxu0 0.0
  %64 = vmatpush1.msra.mxu0 0.0
  %65 = vmatprep.subr.mxu0 0.0
  %66 = vmatpush1.msra.mxu0 0.0
  %67 = vmatprep.subr.mxu0 0.0
  %68 = vmatpush1.msra.mxu0 0.0
  %69 = vmatprep.subr.mxu0 0.0
  %70 = vmatpush1.msra.mxu0 0.0
  %71 = vmatprep.subr.mxu0 0.0
  %72 = vmatpush1.msra.mxu0 0.0
  %73 = vmatprep.subr.mxu0 0.0
  %74 = vmatpush1.msra.mxu0 0.0
  %75 = vmatprep.subr.mxu0 0.0
  %76 = vmatpush1.msra.mxu0 0.0
  %77 = vmatprep.subr.mxu0 0.0
  %78 = vmatpush1.msra.mxu0 0.0
  %79 = vmatprep.subr.mxu0 0.0
  %80 = vmatpush1.msra.mxu0 0.0
  %81 = vmatprep.subr.mxu0 0.0
  %82 = vmatpush1.msra.mxu0 0.0
  %83 = vmatprep.subr.mxu0 0.0
  %84 = vmatpush1.msra.mxu0 0.0
  %85 = vmatprep.subr.mxu0 0.0
  %86 = vmatpush1.msra.mxu0 0.0
  %87 = vmatprep.subr.mxu0 0.0
  %88 = vmatpush1.msra.mxu0 0.0
  %89 = vmatprep.subr.mxu0 0.0
  %90 = vmatpush1.msra.mxu0 0.0
  %91 = vmatprep.subr.mxu0 0.0
  %92 = vmatpush1.msra.mxu0 0.0
  %93 = vmatprep.subr.mxu0 0.0
  %94 = vmatpush1.msra.mxu0 0.0
  %95 = vmatprep.subr.mxu0 0.0
  %96 = vmatpush1.msra.mxu0 0.0
  %97 = vmatprep.subr.mxu0 0.0
  %98 = vmatpush1.msra.mxu0 0.0
  %99 = vmatprep.subr.mxu0 0.0
  %100 = vmatpush1.msra.mxu0 0.0
  %101 = vmatprep.subr.mxu0 0.0
  %102 = vmatpush1.msra.mxu0 0.0
  %103 = vmatprep.subr.mxu0 0.0
  %104 = vmatpush1.msra.mxu0 0.0
  %105 = vmatprep.subr.mxu0 0.0
  %106 = vmatpush1.msra.mxu0 0.0
  %107 = vmatprep.subr.mxu0 0.0
  %108 = vmatpush1.msra.mxu0 0.0
  %109 = vmatprep.mubr.f32.mxu0 0.0
  %110 = vmatmul.mubr.f32.gmra.mrb[0].mxu0 %v43
  %v111 = vpop.f32.mrb[0].mxu0
  %v112 = vadd.f32 %v34, %v111
  %v113 = vpop.f32.mrb[0].mxu0
  %v114 = vadd.f32 %v38, %v113
  %115 = vdwg.mxu0
  %v116 = vmax.f32 %v112, 0.0
  %v117 = vmax.f32 %v114, 0.0
  %v118 = vld [vmem:[%s3] sm:$0xff]
  %v119 = vld [vmem:[%s3 + $0x8] sm:$0xff]
  %v120 = vld [vmem:[%s3 + $0x10] sm:$0xff]
  %v121 = vld [vmem:[%s3 + $0x18] sm:$0xff]
  %v122 = vld [vmem:[%s3 + $0x20] sm:$0xff]
  %v123 = vld [vmem:[%s3 + $0x28] sm:$0xff]
  %v124 = vld [vmem:[%s3 + $0x30] sm:$0xff]
  %v125 = vld [vmem:[%s3 + $0x38] sm:$0xff]
  %v126 = vld [vmem:[%s3 + $0x40] sm:$0xff]
  %v127 = vld [vmem:[%s3 + $0x48] sm:$0xff]
  %v128 = vld [vmem:[%s3 + $0x50] sm:$0xff]
  %v129 = vld [vmem:[%s3 + $0x58] sm:$0xff]
  %v130 = vld [vmem:[%s3 + $0x60] sm:$0xff]
  %v131 = vld [vmem:[%s3 + $0x68] sm:$0xff]
  %v132 = vld [vmem:[%s3 + $0x70] sm:$0xff]
  %v133 = vld [vmem:[%s3 + $0x78] sm:$0xff]
  %v134 = vld [vmem:[%s3 + $0x80] sm:$0xff]
  %v135 = vld [vmem:[%s3 + $0x88] sm:$0xff]
  %v136 = vld [vmem:[%s3 + $0x90] sm:$0xff]
  %v137 = vld [vmem:[%s3 + $0x98] sm:$0xff]
  %v138 = vld [vmem:[%s3 + $0xa0] sm:$0xff]
  %v139 = vld [vmem:[%s3 + $0xa8] sm:$0xff]
  %v140 = vld [vmem:[%s3 + $0xb0] sm:$0xff]
  %v141 = vld [vmem:[%s3 + $0xb8] sm:$0xff]
  %v142 = vld [vmem:[%s3 + $0xc0] sm:$0xff]
  %v143 = vld [vmem:[%s3 + $0xc8] sm:$0xff]
  %v144 = vld [vmem:[%s3 + $0xd0] sm:$0xff]
  %v145 = vld [vmem:[%s3 + $0xd8] sm:$0xff]
  %v146 = vld [vmem:[%s3 + $0xe0] sm:$0xff]
  %v147 = vld [vmem:[%s3 + $0xe8] sm:$0xff]
  %v148 = vld [vmem:[%s3 + $0xf0] sm:$0xff]
  %v149 = vld [vmem:[%s3 + $0xf8] sm:$0xff]
  %v150 = vld [vmem:[%s4] sm:$0x1]
  %v152 = vlaneseq
  %v153 = vshrl.u32 %v152, 7
  %v154 = vsub.s32 0, %v153
  %v155 = vrot.slane %v150, %v154
  %157 = vmatprep.subr.mxu0 0.0
  %158 = vmatpush1.msra.mxu0 %v118
  %159 = vmatprep.subr.mxu0 0.0
  %160 = vmatpush1.msra.mxu0 %v119
  %161 = vmatprep.subr.mxu0 0.0
  %162 = vmatpush1.msra.mxu0 %v120
  %163 = vmatprep.subr.mxu0 0.0
  %164 = vmatpush1.msra.mxu0 %v121
  %165 = vmatprep.subr.mxu0 0.0
  %166 = vmatpush1.msra.mxu0 %v122
  %167 = vmatprep.subr.mxu0 0.0
  %168 = vmatpush1.msra.mxu0 %v123
  %169 = vmatprep.subr.mxu0 0.0
  %170 = vmatpush1.msra.mxu0 %v124
  %171 = vmatprep.subr.mxu0 0.0
  %172 = vmatpush1.msra.mxu0 %v125
  %173 = vmatprep.subr.mxu0 0.0
  %174 = vmatpush1.msra.mxu0 %v126
  %175 = vmatprep.subr.mxu0 0.0
  %176 = vmatpush1.msra.mxu0 %v127
  %177 = vmatprep.subr.mxu0 0.0
  %178 = vmatpush1.msra.mxu0 %v128
  %179 = vmatprep.subr.mxu0 0.0
  %180 = vmatpush1.msra.mxu0 %v129
  %181 = vmatprep.subr.mxu0 0.0
  %182 = vmatpush1.msra.mxu0 %v130
  %183 = vmatprep.subr.mxu0 0.0
  %184 = vmatpush1.msra.mxu0 %v131
  %185 = vmatprep.subr.mxu0 0.0
  %186 = vmatpush1.msra.mxu0 %v132
  %187 = vmatprep.subr.mxu0 0.0
  %188 = vmatpush1.msra.mxu0 %v133
  %189 = vmatprep.subr.mxu0 0.0
  %190 = vmatpush1.msra.mxu0 %v134
  %191 = vmatprep.subr.mxu0 0.0
  %192 = vmatpush1.msra.mxu0 %v135
  %193 = vmatprep.subr.mxu0 0.0
  %194 = vmatpush1.msra.mxu0 %v136
  %195 = vmatprep.subr.mxu0 0.0
  %196 = vmatpush1.msra.mxu0 %v137
  %197 = vmatprep.subr.mxu0 0.0
  %198 = vmatpush1.msra.mxu0 %v138
  %199 = vmatprep.subr.mxu0 0.0
  %200 = vmatpush1.msra.mxu0 %v139
  %201 = vmatprep.subr.mxu0 0.0
  %202 = vmatpush1.msra.mxu0 %v140
  %203 = vmatprep.subr.mxu0 0.0
  %204 = vmatpush1.msra.mxu0 %v141
  %205 = vmatprep.subr.mxu0 0.0
  %206 = vmatpush1.msra.mxu0 %v142
  %207 = vmatprep.subr.mxu0 0.0
  %208 = vmatpush1.msra.mxu0 %v143
  %209 = vmatprep.subr.mxu0 0.0
  %210 = vmatpush1.msra.mxu0 %v144
  %211 = vmatprep.subr.mxu0 0.0
  %212 = vmatpush1.msra.mxu0 %v145
  %213 = vmatprep.subr.mxu0 0.0
  %214 = vmatpush1.msra.mxu0 %v146
  %215 = vmatprep.subr.mxu0 0.0
  %216 = vmatpush1.msra.mxu0 %v147
  %217 = vmatprep.subr.mxu0 0.0
  %218 = vmatpush1.msra.mxu0 %v148
  %219 = vmatprep.subr.mxu0 0.0
  %220 = vmatpush1.msra.mxu0 %v149
  %221 = vmatprep.mubr.f32.mxu0 %v117
  %222 = vmatmul.mubr.f32.gmra.mrb[0].mxu0 %v116
  %v223 = vpop.f32.mrb[0].mxu0
  %v224 = vadd.f32 %v155, %v223
  %v225 = vpop.f32.mrb[0].mxu0
  %226 = vdwg.mxu0
  %vm227 = vcmask 31744
  %228 = vst.msk [vmem:[%s5] sm:$0xff] %vm227, %v224
  // Predicated region
  $region22: #{tpu_custom_call.1} parent=0 // pred_check
    _
  $region23: #{tpu_custom_call.1} parent=0 // pred_check_branch
    %230 = sbr.rel (0) target = $region25
  $region24: #{tpu_custom_call.1} parent=0 // pred_region
    _
  $region25: #{tpu_custom_call.1} parent=0 // pred_fallthru
    _
  // Predicated region
  $region26: #{tpu_custom_call.1} parent=0 // pred_check
    _
  $region27: #{tpu_custom_call.1} parent=0 // pred_check_branch
    %232 = sbr.rel (0) target = $region29
  $region28: #{tpu_custom_call.1} parent=0 // pred_region
    _
  $region29: #{tpu_custom_call.1} parent=0 // pred_fallthru
    _

</llo_original>
